<compile_context>
chip_gen: v7x
topology: tpu7x:2x2x1
jax: 0.10.0
libtpu: 0.0.40
codegen_flags: <defaults>
</compile_context>

<pallas_src>
import jax
import jax.numpy as jnp
from jax.experimental import pallas as pl
from jax.experimental.pallas import tpu as pltpu


def _conv1x1_hsig_kernel(x_ref, w_ref, b_ref, o_ref):
    # x_ref: (1, Cin, t_hw)   activation tile (lane axis = spatial)
    # w_ref: (Cout, Cin)      tiny weight, resident across the grid
    # b_ref: (Cout, 1)        bias with the +3.0 already folded in
    # o_ref: (1, Cout, t_hw)  lane-dense output tile
    x = x_ref[0]          # (Cin, t_hw)
    w = w_ref[...]        # (Cout, Cin)
    b = b_ref[...]        # (Cout, 1)

    cin = x.shape[0]
    # VPU formulation: Cin broadcast FMAs instead of a K=3 MXU matmul
    # (avoids MXU push/pop latency and vreg relayout for a tiny contraction).
    y = b + w[:, 0:1] * x[0:1, :]                 # (Cout, t_hw)
    for c in range(1, cin):                       # static unroll (Cin is tiny)
        y = y + w[:, c:c + 1] * x[c:c + 1, :]

    # clamp(3 + conv, 0, 6) / 6, with the +3 folded into the bias above.
    o_ref[0] = jnp.clip(y, 0.0, 6.0) * (1.0 / 6.0)


def _pick_hw_tile(hw, max_tile=65536):
    """Largest multiple-of-128 tile that divides hw and is <= max_tile.

    max_tile=64K f32 elements keeps the double-buffered in+out blocks
    (~2 * (Cin + Cout) * 64K * 4B ~= 5.5 MiB) well inside v7x's 32 MiB
    scoped-VMEM default while still being fat enough to hide per-step
    pipeline overhead.
    """
    if hw <= max_tile:
        return hw
    if hw % 128 != 0:
        return hw  # irregular spatial size: single full block along HW
    t = (max_tile // 128) * 128
    while t >= 128:
        if hw % t == 0:
            return t
        t -= 128
    return hw


def conv1x1_hardsig(x_nchw, weight, bias):
    """x_nchw: (N, Cin, H, W); weight: (Cout, Cin, 1, 1); bias: (Cout,)."""
    N, Cin, H, W = x_nchw.shape
    Cout = weight.shape[0]
    HW = H * W

    # Free reshapes only -- no transposes, no padding copies.
    x3 = x_nchw.reshape(N, Cin, HW).astype(jnp.float32)          # (N, Cin, HW)
    w2d = weight.reshape(Cout, Cin).astype(jnp.float32)          # (Cout, Cin)
    b2d = (bias.astype(jnp.float32) + 3.0).reshape(Cout, 1)      # (+3 folded in)

    t_hw = _pick_hw_tile(HW)
    grid = (N, HW // t_hw)

    bytes_accessed = 4 * (N * Cin * HW + N * Cout * HW + Cout * Cin + Cout)
    cost = pl.CostEstimate(
        flops=2 * N * HW * Cin * Cout + 3 * N * HW * Cout,
        transcendentals=0,
        bytes_accessed=bytes_accessed,
    )

    out = pl.pallas_call(
        _conv1x1_hsig_kernel,
        out_shape=jax.ShapeDtypeStruct((N, Cout, HW), jnp.float32),
        grid_spec=pltpu.PrefetchScalarGridSpec(
            num_scalar_prefetch=0,
            grid=grid,
            in_specs=[
                pl.BlockSpec((1, Cin, t_hw), lambda n, j: (n, 0, j)),
                pl.BlockSpec((Cout, Cin), lambda n, j: (0, 0)),   # resident
                pl.BlockSpec((Cout, 1), lambda n, j: (0, 0)),     # resident
            ],
            out_specs=pl.BlockSpec((1, Cout, t_hw), lambda n, j: (n, 0, j)),
        ),
        compiler_params=pltpu.CompilerParams(
            dimension_semantics=("parallel", "parallel"),
        ),
        cost_estimate=cost,
    )(x3, w2d, b2d)

    return out.reshape(N, Cout, H, W)   # free reshape: already NCHW


if __name__ == "__main__":
    key = jax.random.PRNGKey(0)
    kx, kw, kb = jax.random.split(key, 3)

    # Shapes consistent with the module: Conv2d(3, 8, 1) on (5, 3, 64, 64).
    N, Cin, H, W, Cout = 5, 3, 64, 64, 8
    x = jax.random.normal(kx, (N, Cin, H, W), dtype=jnp.float32)

    # Deterministic parameter init (uniform like PyTorch's default fan-in bound).
    bound = 1.0 / (Cin ** 0.5)
    weight = jax.random.uniform(kw, (Cout, Cin, 1, 1), jnp.float32, -bound, bound)
    bias = jax.random.uniform(kb, (Cout,), jnp.float32, -bound, bound)

    out = conv1x1_hardsig(x, weight, bias)
    out = jax.block_until_ready(out)

    # Pure-JAX reference check of the forward semantics.
    ref = jnp.einsum("nchw,oc->nohw", x, weight.reshape(Cout, Cin)) + bias[None, :, None, None]
    ref = jnp.clip(ref + 3.0, 0.0, 6.0) / 6.0
    assert out.shape == (N, Cout, H, W)
    assert jnp.allclose(out, ref, atol=1e-5, rtol=1e-5)

    print("KERNEL_OK")
</pallas_src>

<mosaic_0001>
module attributes {stable_mosaic.version = 11 : i64} {
  func.func @_conv1x1_hsig_kernel(%arg0: i32, %arg1: i32, %arg2: memref<1x3x4096xf32, #tpu.memory_space<vmem>>, %arg3: memref<8x3xf32, #tpu.memory_space<vmem>>, %arg4: memref<8x1xf32, #tpu.memory_space<vmem>>, %arg5: memref<1x8x4096xf32, #tpu.memory_space<vmem>>) attributes {dimension_semantics = [#tpu.dimension_semantics<parallel>, #tpu.dimension_semantics<parallel>], iteration_bounds = array<i64: 5, 1>, scalar_prefetch = 0 : i64, scratch_operands = 0 : i64, tpu.core_type = #tpu.core_type<tc>, window_params = [{transform_indices = @transform_0, window_bounds = array<i64: 1, 3, 4096>}, {pipeline_mode = #tpu.pipeline_mode<synchronous>, transform_indices = @transform_1, window_bounds = array<i64: 8, 3>}, {pipeline_mode = #tpu.pipeline_mode<synchronous>, transform_indices = @transform_2, window_bounds = array<i64: 8, 1>}, {transform_indices = @transform_3, window_bounds = array<i64: 1, 8, 4096>}]} {
    %c0 = arith.constant 0 : index
    %c0_0 = arith.constant 0 : index
    %c0_1 = arith.constant 0 : index
    %0 = vector.load %arg2[%c0, %c0_0, %c0_1] : memref<1x3x4096xf32, #tpu.memory_space<vmem>>, vector<1x3x4096xf32>
    %1 = vector.shape_cast %0 : vector<1x3x4096xf32> to vector<3x4096xf32>
    %c0_2 = arith.constant 0 : index
    %c0_3 = arith.constant 0 : index
    %2 = vector.load %arg3[%c0_2, %c0_3] : memref<8x3xf32, #tpu.memory_space<vmem>>, vector<8x3xf32>
    %c0_4 = arith.constant 0 : index
    %c0_5 = arith.constant 0 : index
    %3 = vector.load %arg4[%c0_4, %c0_5] : memref<8x1xf32, #tpu.memory_space<vmem>>, vector<8x1xf32>
    %4 = vector.extract_strided_slice %2 {offsets = [0, 0], sizes = [8, 1], strides = [1, 1]} : vector<8x3xf32> to vector<8x1xf32>
    %5 = vector.extract_strided_slice %1 {offsets = [0, 0], sizes = [1, 4096], strides = [1, 1]} : vector<3x4096xf32> to vector<1x4096xf32>
    %6 = vector.broadcast %4 : vector<8x1xf32> to vector<8x4096xf32>
    %7 = vector.broadcast %5 : vector<1x4096xf32> to vector<8x4096xf32>
    %8 = arith.mulf %6, %7 : vector<8x4096xf32>
    %9 = vector.broadcast %3 : vector<8x1xf32> to vector<8x4096xf32>
    %10 = arith.addf %9, %8 : vector<8x4096xf32>
    %11 = vector.extract_strided_slice %2 {offsets = [0, 1], sizes = [8, 1], strides = [1, 1]} : vector<8x3xf32> to vector<8x1xf32>
    %12 = vector.extract_strided_slice %1 {offsets = [1, 0], sizes = [1, 4096], strides = [1, 1]} : vector<3x4096xf32> to vector<1x4096xf32>
    %13 = vector.broadcast %11 : vector<8x1xf32> to vector<8x4096xf32>
    %14 = vector.broadcast %12 : vector<1x4096xf32> to vector<8x4096xf32>
    %15 = arith.mulf %13, %14 : vector<8x4096xf32>
    %16 = arith.addf %10, %15 : vector<8x4096xf32>
    %17 = vector.extract_strided_slice %2 {offsets = [0, 2], sizes = [8, 1], strides = [1, 1]} : vector<8x3xf32> to vector<8x1xf32>
    %18 = vector.extract_strided_slice %1 {offsets = [2, 0], sizes = [1, 4096], strides = [1, 1]} : vector<3x4096xf32> to vector<1x4096xf32>
    %19 = vector.broadcast %17 : vector<8x1xf32> to vector<8x4096xf32>
    %20 = vector.broadcast %18 : vector<1x4096xf32> to vector<8x4096xf32>
    %21 = arith.mulf %19, %20 : vector<8x4096xf32>
    %22 = arith.addf %16, %21 : vector<8x4096xf32>
    %cst = arith.constant 0.000000e+00 : f32
    %cst_6 = arith.constant 6.000000e+00 : f32
    %23 = vector.broadcast %cst : f32 to vector<8x4096xf32>
    %24 = arith.maximumf %23, %22 : vector<8x4096xf32>
    %25 = vector.broadcast %cst_6 : f32 to vector<8x4096xf32>
    %26 = arith.minimumf %25, %24 : vector<8x4096xf32>
    %cst_7 = arith.constant 0.166666672 : f32
    %27 = vector.broadcast %cst_7 : f32 to vector<8x4096xf32>
    %28 = arith.mulf %26, %27 : vector<8x4096xf32>
    %c0_8 = arith.constant 0 : index
    %c0_9 = arith.constant 0 : index
    %c0_10 = arith.constant 0 : index
    %29 = vector.load %arg5[%c0_8, %c0_9, %c0_10] : memref<1x8x4096xf32, #tpu.memory_space<vmem>>, vector<1x8x4096xf32>
    %30 = vector.shape_cast %29 : vector<1x8x4096xf32> to vector<8x4096xf32>
    %31 = vector.shape_cast %28 : vector<8x4096xf32> to vector<1x8x4096xf32>
    tpu.vector_store %arg5[%c0_8, %c0_9, %c0_10], %31 {strides = array<i32>} : memref<1x8x4096xf32, #tpu.memory_space<vmem>>, vector<1x8x4096xf32>,
    return
  }
  func.func @transform_0(%arg0: i32, %arg1: i32) -> (i32, i32, i32) {
    %c0_i32 = arith.constant 0 : i32
    %c0_i32_0 = arith.constant 0 : i32
    return %arg0, %c0_i32, %arg1 : i32, i32, i32
  }
  func.func @transform_1(%arg0: i32, %arg1: i32) -> (i32, i32) {
    %c0_i32 = arith.constant 0 : i32
    %c0_i32_0 = arith.constant 0 : i32
    %c0_i32_1 = arith.constant 0 : i32
    return %c0_i32, %c0_i32_0 : i32, i32
  }
  func.func @transform_2(%arg0: i32, %arg1: i32) -> (i32, i32) {
    %c0_i32 = arith.constant 0 : i32
    %c0_i32_0 = arith.constant 0 : i32
    %c0_i32_1 = arith.constant 0 : i32
    return %c0_i32, %c0_i32_0 : i32, i32
  }
  func.func @transform_3(%arg0: i32, %arg1: i32) -> (i32, i32, i32) {
    %c0_i32 = arith.constant 0 : i32
    %c0_i32_0 = arith.constant 0 : i32
    return %arg0, %c0_i32, %arg1 : i32, i32, i32
  }
}

</mosaic_0001>

<llo_original>
// kernel: tpu_custom_call.1
$region0: #{tpu_custom_call.1}
  #allocation0 [shape = 'u32[]', space=smem, size = 0x4, offset = 0x4, fixed_abs, tag = 'smem constant byte address 0x4 - core index']
  #allocation1 [shape = 'u32[144,128]{1,0:T(1,128)}', space=vmem, size = 0x12000, scoped, tag = 'internal scratch']
  %s0 = inlined_call_operand.hbm [shape: f32[5,3,4096], index: 0, kind: input, shape index: {}]
  %s1 = inlined_call_operand.vmem [shape: f32[8,3], index: 1, kind: input, shape index: {}]
  %s2 = inlined_call_operand.vmem [shape: f32[8,1], index: 2, kind: input, shape index: {}]
  %s3 = inlined_call_operand.hbm [shape: f32[5,8,4096], index: 3, kind: output, shape index: {}]
  %s4 = sld [smem:[#allocation0]]
  $region49: #{tpu_custom_call.1} parent=0
    _
  %s6 = ssub.s32 1, %s4
  %s7 = scalar_select 0, %s6, %s4
  $region1: #{tpu_custom_call.1} parent=0
    #allocation2 [shape = 'u8[131072]{0}', space=vmem, size = 0x20000, scoped, tag = 'input window, operand 0']
    #allocation3 [shape = 's32[2]{0}', space=sflag, size = 0x8, scoped, tag = 'scoped memory for tpu_custom_call.1']
    #allocation4 [shape = 's32[2]{0}', space=sflag, size = 0x8, scoped, tag = 'scoped memory for tpu_custom_call.1']
    #allocation5 [shape = 'u8[262144]{0}', space=vmem, size = 0x40000, scoped, tag = 'output window, operand 0']
    %8 = vsyncpa [#allocation3], 0
    %s9 = scalar_lea.sflag [#allocation3], 1
    %10 = vsyncpa %s9, 0
    %11 = vsyncpa [#allocation4], 0
    %s12 = scalar_lea.sflag [#allocation4], 1
    %13 = vsyncpa %s12, 0
    loop: start=0, step=1, limit=7
    $region2: #{tpu_custom_call.1} parent=1 // loop_pre_header
      _
    $region3: #{tpu_custom_call.1} parent=1 // loop_header
      %s15 = sphi 0, %s19
      %p16 = scmp.ge.s32.totalorder %s15, 7
      %s22 = sphi 0, %s34
      %s23 = sphi 0, %s30
      %s24 = sphi 0, %s22
      %s25 = sphi 0, %s23
      %s26 = sphi 0, %s24
      %s27 = sphi 0, %s25
      %s39 = sphi 0, %s41
      %s42 = sphi 0, %s39
      %s43 = sphi 0, %s42
      %s59 = sphi 0, %s43
      %s63 = sphi 0, %s63
      %s65 = sphi 0, %s63
      %s66 = sphi 0, %s65
      %s80 = sphi 0, %s66
      %s84 = sphi 0, %s84
      %s86 = sphi 0, %s84
      %s87 = sphi 0, %s86
      %s101 = sphi 0, %s87
      %s109 = sphi 0, %s111
      %s112 = sphi 0, %s109
      %s113 = sphi 0, %s112
      %s129 = sphi 0, %s113
    $region4: #{tpu_custom_call.1} parent=1 // loop_header_branch
      %18 = sbr.rel (%p16) target = $region8
    $region5: #{tpu_custom_call.1} parent=1 // loop_body
      %s20 = ssub.s32 %s15, 1
      %s21 = ssub.s32 %s15, 2
      %s28 = sadd.s32 1, %s23
      %p29 = scmp.ge.s32.totalorder %s28, 1
      %s30 = scalar_select %p29, 0, %s28
      %s31 = sadd.s32 1, %s22
      %s32 = scalar_select %p29, %s31, %s22
      %p33 = scmp.ge.s32.totalorder %s32, 5
      %s34 = scalar_select %p33, 0, %s32
      %s35 = ssub.s32 %s22, %s34
      %s36 = ssub.s32 %s23, %s30
      %s37 = sor.u32 %s35, %s36
      %p38 = scmp.eq.s32.totalorder %s37, 0
      %s40 = sadd.s32 %s39, 1
      %s41 = scalar_select %p38, %s39, %s40
      %p44 = pneg %p38
      %p45 = scmp.eq.s32.totalorder %s15, 4
      %p46 = por %p44, %p45
      %p47 = scmp.ne.s32.totalorder %s39, %s42
      %p48 = scmp.eq.s32.totalorder %s15, 0
      %p49 = por %p47, %p48
      %p50 = scmp.ne.s32.totalorder %s39, %s42
      %p51 = scmp.eq.s32.totalorder %s20, 4
      %p52 = por %p50, %p51
      %p53 = scmp.ne.s32.totalorder %s42, %s43
      %p54 = scmp.eq.s32.totalorder %s20, 0
      %p55 = por %p53, %p54
      %p56 = scmp.ne.s32.totalorder %s42, %s43
      %p57 = scmp.eq.s32.totalorder %s21, 4
      %p58 = por %p56, %p57
      %p60 = scmp.ne.s32.totalorder %s43, %s59
      %p61 = scmp.eq.s32.totalorder %s21, 0
      %p62 = por %p60, %p61
      %s64 = sadd.s32 %s63, 1
      %p67 = scmp.eq.s32.totalorder %s15, 4
      %p68 = scmp.ne.s32.totalorder %s63, %s65
      %p69 = scmp.eq.s32.totalorder %s15, 0
      %p70 = por %p68, %p69
      %p71 = scmp.ne.s32.totalorder %s63, %s65
      %p72 = scmp.eq.s32.totalorder %s20, 4
      %p73 = por %p71, %p72
      %p74 = scmp.ne.s32.totalorder %s65, %s66
      %p75 = scmp.eq.s32.totalorder %s20, 0
      %p76 = por %p74, %p75
      %p77 = scmp.ne.s32.totalorder %s65, %s66
      %p78 = scmp.eq.s32.totalorder %s21, 4
      %p79 = por %p77, %p78
      %p81 = scmp.ne.s32.totalorder %s66, %s80
      %p82 = scmp.eq.s32.totalorder %s21, 0
      %p83 = por %p81, %p82
      %s85 = sadd.s32 %s84, 1
      %p88 = scmp.eq.s32.totalorder %s15, 4
      %p89 = scmp.ne.s32.totalorder %s84, %s86
      %p90 = scmp.eq.s32.totalorder %s15, 0
      %p91 = por %p89, %p90
      %p92 = scmp.ne.s32.totalorder %s84, %s86
      %p93 = scmp.eq.s32.totalorder %s20, 4
      %p94 = por %p92, %p93
      %p95 = scmp.ne.s32.totalorder %s86, %s87
      %p96 = scmp.eq.s32.totalorder %s20, 0
      %p97 = por %p95, %p96
      %p98 = scmp.ne.s32.totalorder %s86, %s87
      %p99 = scmp.eq.s32.totalorder %s21, 4
      %p100 = por %p98, %p99
      %p102 = scmp.ne.s32.totalorder %s87, %s101
      %p103 = scmp.eq.s32.totalorder %s21, 0
      %p104 = por %p102, %p103
      %s105 = ssub.s32 %s22, %s34
      %s106 = ssub.s32 %s23, %s30
      %s107 = sor.u32 %s105, %s106
      %p108 = scmp.eq.s32.totalorder %s107, 0
      %s110 = sadd.s32 %s109, 1
      %s111 = scalar_select %p108, %s109, %s110
      %p114 = pneg %p108
      %p115 = scmp.eq.s32.totalorder %s15, 4
      %p116 = por %p114, %p115
      %p117 = scmp.ne.s32.totalorder %s109, %s112
      %p118 = scmp.eq.s32.totalorder %s15, 0
      %p119 = por %p117, %p118
      %p120 = scmp.ne.s32.totalorder %s109, %s112
      %p121 = scmp.eq.s32.totalorder %s20, 4
      %p122 = por %p120, %p121
      %p123 = scmp.ne.s32.totalorder %s112, %s113
      %p124 = scmp.eq.s32.totalorder %s20, 0
      %p125 = por %p123, %p124
      %p126 = scmp.ne.s32.totalorder %s112, %s113
      %p127 = scmp.eq.s32.totalorder %s21, 4
      %p128 = por %p126, %p127
      %p130 = scmp.ne.s32.totalorder %s113, %s129
      %p131 = scmp.eq.s32.totalorder %s21, 0
      %p132 = por %p130, %p131
      %p133 = scmp.le.s32.totalorder 1, %s15
      %p134 = scmp.lt.s32.totalorder %s15, 6
      %p135 = pnand %p133, %p134
      %p136 = pneg %p135
      // Predicated region
      $region9: #{tpu_custom_call.1} parent=5 // pred_check
        _
      $region10: #{tpu_custom_call.1} parent=5 // pred_check_branch
        %138 = sbr.rel (%p135) target = $region12
      $region11: #{tpu_custom_call.1} parent=5 // pred_region
        %s139 = ssub.s32 %s15, 1
        // Predicated region
        $region13: #{tpu_custom_call.1} parent=11 // pred_check
          %p140 = pneg %p76
        $region14: #{tpu_custom_call.1} parent=11 // pred_check_branch
          %142 = sbr.rel (%p140) target = $region16
        $region15: #{tpu_custom_call.1} parent=11 // pred_region
          _
        $region16: #{tpu_custom_call.1} parent=11 // pred_fallthru
          _
        // Predicated region
        $region17: #{tpu_custom_call.1} parent=11 // pred_check
          %p143 = pneg %p97
        $region18: #{tpu_custom_call.1} parent=11 // pred_check_branch
          %145 = sbr.rel (%p143) target = $region20
        $region19: #{tpu_custom_call.1} parent=11 // pred_region
          _
        $region20: #{tpu_custom_call.1} parent=11 // pred_fallthru
          _
      $region12: #{tpu_custom_call.1} parent=5 // pred_fallthru
        _
      %p146 = scmp.lt.s32.totalorder %s15, 5
      // Predicated region
      $region21: #{tpu_custom_call.1} parent=5 // pred_check
        %p147 = pneg %p146
      $region22: #{tpu_custom_call.1} parent=5 // pred_check_branch
        %149 = sbr.rel (%p147) target = $region24
      $region23: #{tpu_custom_call.1} parent=5 // pred_region
        // Predicated region
        $region25: #{tpu_custom_call.1} parent=23 // pred_check
          %p150 = pneg %p49
        $region26: #{tpu_custom_call.1} parent=23 // pred_check_branch
          %152 = sbr.rel (%p150) target = $region28
        $region27: #{tpu_custom_call.1} parent=23 // pred_region
          %s153 = sand.u32 %s39, 1
          %s154 = scalar_lea.sflag [#allocation3], %s153
          %s155 = sand.u32 %s39, 1
          %s156 = smul.addr %s155, 128
          %s157 = scalar_lea.vmem [#allocation2], %s156
          %s158 = smul.u32 32, %s23
          %s160 = ssub.s32 2048, 2048
          %161 = vsyncadd %s154, %s160
          %s162 = smul.addr %s22, 32
          %s163 = sadd.s32 %s158, %s162
          %s164 = smul.addr %s163, 64
          %s165 = scalar_lea.hbm %s0, %s164
          %s167 = sshll.u32 %s157, 4
          %s168 = int_to_ptr.vmem [resolvable:$true] %s167
          %170 = dma.hbm_to_vmem [thread:$0]  %s165, 2048, %s168, %s154
        $region28: #{tpu_custom_call.1} parent=23 // pred_fallthru
          _
      $region24: #{tpu_custom_call.1} parent=5 // pred_fallthru
        _
      %p171 = scmp.le.s32.totalorder 1, %s15
      %p172 = scmp.lt.s32.totalorder %s15, 6
      %p173 = pnand %p171, %p172
      %p174 = pneg %p173
      // Predicated region
      $region29: #{tpu_custom_call.1} parent=5 // pred_check
        _
      $region30: #{tpu_custom_call.1} parent=5 // pred_check_branch
        %176 = sbr.rel (%p173) target = $region32
      $region31: #{tpu_custom_call.1} parent=5 // pred_region
        %s177 = ssub.s32 %s15, 1
        %s178 = sand.u32 %s42, 1
        %s179 = scalar_lea.sflag [#allocation3], %s178
        %s180 = sand.u32 %s42, 1
        %s181 = smul.addr %s180, 128
        %s182 = scalar_lea.vmem [#allocation2], %s181
        // Predicated region
        $region33: #{tpu_custom_call.1} parent=31 // pred_check
          %p183 = pneg %p55
        $region34: #{tpu_custom_call.1} parent=31 // pred_check_branch
          %185 = sbr.rel (%p183) target = $region36
        $region35: #{tpu_custom_call.1} parent=31 // pred_region
          %186 = dma.done %s179, 2048
        $region36: #{tpu_custom_call.1} parent=31 // pred_fallthru
          _
        %s187 = sand.u32 %s42, 1
        %s188 = scalar_lea.sflag [#allocation3], %s187
        %s189 = sand.u32 %s42, 1
        %s190 = smul.addr %s189, 128
        %s191 = scalar_lea.vmem [#allocation2], %s190
        %p192 = pneg %p55
        %p193 = pneg %p52
        %p194 = pneg %p76
        %p195 = pneg %p73
        %p196 = pneg %p97
        %p197 = pneg %p94
        %p198 = pneg %p125
        %p199 = pneg %p122
        %s200 = sand.u32 %s112, 1
        %s201 = scalar_lea.sflag [#allocation4], %s200
        %s202 = sand.u32 %s112, 1
        %s203 = smul.addr %s202, 256
        %s204 = scalar_lea.vmem [#allocation5], %s203
        %s205 = smul.u32 32, %s25
        %s206 = smul.u32 32, %s25
        %v207 = vld [vmem:[%s182] sm:$0x77]
        %v208 = vld [vmem:[%s182 + $0x8] sm:$0x77]
        %v209 = vld [vmem:[%s182 + $0x10] sm:$0x77]
        %v210 = vld [vmem:[%s182 + $0x18] sm:$0x77]
        %v211 = vld [vmem:[%s182 + $0x20] sm:$0x77]
        %v212 = vld [vmem:[%s182 + $0x28] sm:$0x77]
        %v213 = vld [vmem:[%s182 + $0x30] sm:$0x77]
        %v214 = vld [vmem:[%s182 + $0x38] sm:$0x77]
        %v215 = vld [vmem:[%s182 + $0x40] sm:$0x77]
        %v216 = vld [vmem:[%s182 + $0x48] sm:$0x77]
        %v217 = vld [vmem:[%s182 + $0x50] sm:$0x77]
        %v218 = vld [vmem:[%s182 + $0x58] sm:$0x77]
        %v219 = vld [vmem:[%s182 + $0x60] sm:$0x77]
        %v220 = vld [vmem:[%s182 + $0x68] sm:$0x77]
        %v221 = vld [vmem:[%s182 + $0x70] sm:$0x77]
        %v222 = vld [vmem:[%s182 + $0x78] sm:$0x77]
        %v223 = vld [vmem:[%s1] sm:$0xff]
        %v224 = vld [vmem:[%s2] sm:$0xff]
        %226 = vset.pattern.permute.xlu0 0
        %227 = vperm.xlu0 %226, %v223
        %v228 = vpop.permute.xlu0 %227
        %v246 = vlaneseq
        %v247 = vshrl.u32 %v246, 7
        %v248 = vsub.s32 0, %v247
        %v249 = vrot.slane %v207, %v248
        %v250 = vlaneseq
        %v251 = vshrl.u32 %v250, 7
        %v252 = vsub.s32 4, %v251
        %v253 = vrot.slane %v207, %v252
        %v254 = vlaneseq
        %v255 = vshrl.u32 %v254, 7
        %v256 = vsub.s32 0, %v255
        %v257 = vrot.slane %v208, %v256
        %v258 = vlaneseq
        %v259 = vshrl.u32 %v258, 7
        %v260 = vsub.s32 4, %v259
        %v261 = vrot.slane %v208, %v260
        %v262 = vlaneseq
        %v263 = vshrl.u32 %v262, 7
        %v264 = vsub.s32 0, %v263
        %v265 = vrot.slane %v209, %v264
        %v266 = vlaneseq
        %v267 = vshrl.u32 %v266, 7
        %v268 = vsub.s32 4, %v267
        %v269 = vrot.slane %v209, %v268
        %v270 = vlaneseq
        %v271 = vshrl.u32 %v270, 7
        %v272 = vsub.s32 0, %v271
        %v273 = vrot.slane %v210, %v272
        %v274 = vlaneseq
        %v275 = vshrl.u32 %v274, 7
        %v276 = vsub.s32 4, %v275
        %v277 = vrot.slane %v210, %v276
        %v278 = vlaneseq
        %v279 = vshrl.u32 %v278, 7
        %v280 = vsub.s32 0, %v279
        %v281 = vrot.slane %v211, %v280
        %v282 = vlaneseq
        %v283 = vshrl.u32 %v282, 7
        %v284 = vsub.s32 4, %v283
        %v285 = vrot.slane %v211, %v284
        %v286 = vlaneseq
        %v287 = vshrl.u32 %v286, 7
        %v288 = vsub.s32 0, %v287
        %v289 = vrot.slane %v212, %v288
        %v290 = vlaneseq
        %v291 = vshrl.u32 %v290, 7
        %v292 = vsub.s32 4, %v291
        %v293 = vrot.slane %v212, %v292
        %v294 = vlaneseq
        %v295 = vshrl.u32 %v294, 7
        %v296 = vsub.s32 0, %v295
        %v297 = vrot.slane %v213, %v296
        %v298 = vlaneseq
        %v299 = vshrl.u32 %v298, 7
        %v300 = vsub.s32 4, %v299
        %v301 = vrot.slane %v213, %v300
        %v302 = vlaneseq
        %v303 = vshrl.u32 %v302, 7
        %v304 = vsub.s32 0, %v303
        %v305 = vrot.slane %v214, %v304
        %v306 = vlaneseq
        %v307 = vshrl.u32 %v306, 7
        %v308 = vsub.s32 4, %v307
        %v309 = vrot.slane %v214, %v308
        %v310 = vlaneseq
        %v311 = vshrl.u32 %v310, 7
        %v312 = vsub.s32 0, %v311
        %v313 = vrot.slane %v215, %v312
        %v314 = vlaneseq
        %v315 = vshrl.u32 %v314, 7
        %v316 = vsub.s32 4, %v315
        %v317 = vrot.slane %v215, %v316
        %v318 = vlaneseq
        %v319 = vshrl.u32 %v318, 7
        %v320 = vsub.s32 0, %v319
        %v321 = vrot.slane %v216, %v320
        %v322 = vlaneseq
        %v323 = vshrl.u32 %v322, 7
        %v324 = vsub.s32 4, %v323
        %v325 = vrot.slane %v216, %v324
        %v326 = vlaneseq
        %v327 = vshrl.u32 %v326, 7
        %v328 = vsub.s32 0, %v327
        %v329 = vrot.slane %v217, %v328
        %v330 = vlaneseq
        %v331 = vshrl.u32 %v330, 7
        %v332 = vsub.s32 4, %v331
        %v333 = vrot.slane %v217, %v332
        %v334 = vlaneseq
        %v335 = vshrl.u32 %v334, 7
        %v336 = vsub.s32 0, %v335
        %v337 = vrot.slane %v218, %v336
        %v338 = vlaneseq
        %v339 = vshrl.u32 %v338, 7
        %v340 = vsub.s32 4, %v339
        %v341 = vrot.slane %v218, %v340
        %v342 = vlaneseq
        %v343 = vshrl.u32 %v342, 7
        %v344 = vsub.s32 0, %v343
        %v345 = vrot.slane %v219, %v344
        %v346 = vlaneseq
        %v347 = vshrl.u32 %v346, 7
        %v348 = vsub.s32 4, %v347
        %v349 = vrot.slane %v219, %v348
        %v350 = vlaneseq
        %v351 = vshrl.u32 %v350, 7
        %v352 = vsub.s32 0, %v351
        %v353 = vrot.slane %v220, %v352
        %v354 = vlaneseq
        %v355 = vshrl.u32 %v354, 7
        %v356 = vsub.s32 4, %v355
        %v357 = vrot.slane %v220, %v356
        %v358 = vlaneseq
        %v359 = vshrl.u32 %v358, 7
        %v360 = vsub.s32 0, %v359
        %v361 = vrot.slane %v221, %v360
        %v362 = vlaneseq
        %v363 = vshrl.u32 %v362, 7
        %v364 = vsub.s32 4, %v363
        %v365 = vrot.slane %v221, %v364
        %v366 = vlaneseq
        %v367 = vshrl.u32 %v366, 7
        %v368 = vsub.s32 0, %v367
        %v369 = vrot.slane %v222, %v368
        %v370 = vlaneseq
        %v371 = vshrl.u32 %v370, 7
        %v372 = vsub.s32 4, %v371
        %v373 = vrot.slane %v222, %v372
        %v406 = vlaneseq
        %v407 = vshrl.u32 %v406, 7
        %v408 = vsub.s32 0, %v407
        %v409 = vrot.slane %v249, %v408
        %v410 = vlaneseq
        %v411 = vshrl.u32 %v410, 7
        %v412 = vsub.s32 0, %v411
        %v413 = vrot.slane %v253, %v412
        %v414 = vlaneseq
        %v415 = vshrl.u32 %v414, 7
        %v416 = vsub.s32 0, %v415
        %v417 = vrot.slane %v257, %v416
        %v418 = vlaneseq
        %v419 = vshrl.u32 %v418, 7
        %v420 = vsub.s32 0, %v419
        %v421 = vrot.slane %v261, %v420
        %v422 = vlaneseq
        %v423 = vshrl.u32 %v422, 7
        %v424 = vsub.s32 0, %v423
        %v425 = vrot.slane %v265, %v424
        %v426 = vlaneseq
        %v427 = vshrl.u32 %v426, 7
        %v428 = vsub.s32 0, %v427
        %v429 = vrot.slane %v269, %v428
        %v430 = vlaneseq
        %v431 = vshrl.u32 %v430, 7
        %v432 = vsub.s32 0, %v431
        %v433 = vrot.slane %v273, %v432
        %v434 = vlaneseq
        %v435 = vshrl.u32 %v434, 7
        %v436 = vsub.s32 0, %v435
        %v437 = vrot.slane %v277, %v436
        %v438 = vlaneseq
        %v439 = vshrl.u32 %v438, 7
        %v440 = vsub.s32 0, %v439
        %v441 = vrot.slane %v281, %v440
        %v442 = vlaneseq
        %v443 = vshrl.u32 %v442, 7
        %v444 = vsub.s32 0, %v443
        %v445 = vrot.slane %v285, %v444
        %v446 = vlaneseq
        %v447 = vshrl.u32 %v446, 7
        %v448 = vsub.s32 0, %v447
        %v449 = vrot.slane %v289, %v448
        %v450 = vlaneseq
        %v451 = vshrl.u32 %v450, 7
        %v452 = vsub.s32 0, %v451
        %v453 = vrot.slane %v293, %v452
        %v454 = vlaneseq
        %v455 = vshrl.u32 %v454, 7
        %v456 = vsub.s32 0, %v455
        %v457 = vrot.slane %v297, %v456
        %v458 = vlaneseq
        %v459 = vshrl.u32 %v458, 7
        %v460 = vsub.s32 0, %v459
        %v461 = vrot.slane %v301, %v460
        %v462 = vlaneseq
        %v463 = vshrl.u32 %v462, 7
        %v464 = vsub.s32 0, %v463
        %v465 = vrot.slane %v305, %v464
        %v466 = vlaneseq
        %v467 = vshrl.u32 %v466, 7
        %v468 = vsub.s32 0, %v467
        %v469 = vrot.slane %v309, %v468
        %v470 = vlaneseq
        %v471 = vshrl.u32 %v470, 7
        %v472 = vsub.s32 0, %v471
        %v473 = vrot.slane %v313, %v472
        %v474 = vlaneseq
        %v475 = vshrl.u32 %v474, 7
        %v476 = vsub.s32 0, %v475
        %v477 = vrot.slane %v317, %v476
        %v478 = vlaneseq
        %v479 = vshrl.u32 %v478, 7
        %v480 = vsub.s32 0, %v479
        %v481 = vrot.slane %v321, %v480
        %v482 = vlaneseq
        %v483 = vshrl.u32 %v482, 7
        %v484 = vsub.s32 0, %v483
        %v485 = vrot.slane %v325, %v484
        %v486 = vlaneseq
        %v487 = vshrl.u32 %v486, 7
        %v488 = vsub.s32 0, %v487
        %v489 = vrot.slane %v329, %v488
        %v490 = vlaneseq
        %v491 = vshrl.u32 %v490, 7
        %v492 = vsub.s32 0, %v491
        %v493 = vrot.slane %v333, %v492
        %v494 = vlaneseq
        %v495 = vshrl.u32 %v494, 7
        %v496 = vsub.s32 0, %v495
        %v497 = vrot.slane %v337, %v496
        %v498 = vlaneseq
        %v499 = vshrl.u32 %v498, 7
        %v500 = vsub.s32 0, %v499
        %v501 = vrot.slane %v341, %v500
        %v502 = vlaneseq
        %v503 = vshrl.u32 %v502, 7
        %v504 = vsub.s32 0, %v503
        %v505 = vrot.slane %v345, %v504
        %v506 = vlaneseq
        %v507 = vshrl.u32 %v506, 7
        %v508 = vsub.s32 0, %v507
        %v509 = vrot.slane %v349, %v508
        %v510 = vlaneseq
        %v511 = vshrl.u32 %v510, 7
        %v512 = vsub.s32 0, %v511
        %v513 = vrot.slane %v353, %v512
        %v514 = vlaneseq
        %v515 = vshrl.u32 %v514, 7
        %v516 = vsub.s32 0, %v515
        %v517 = vrot.slane %v357, %v516
        %v518 = vlaneseq
        %v519 = vshrl.u32 %v518, 7
        %v520 = vsub.s32 0, %v519
        %v521 = vrot.slane %v361, %v520
        %v522 = vlaneseq
        %v523 = vshrl.u32 %v522, 7
        %v524 = vsub.s32 0, %v523
        %v525 = vrot.slane %v365, %v524
        %v526 = vlaneseq
        %v527 = vshrl.u32 %v526, 7
        %v528 = vsub.s32 0, %v527
        %v529 = vrot.slane %v369, %v528
        %v530 = vlaneseq
        %v531 = vshrl.u32 %v530, 7
        %v532 = vsub.s32 0, %v531
        %v533 = vrot.slane %v373, %v532
        %v534 = vmul.f32 %v228, %v409
        %v535 = vmul.f32 %v228, %v413
        %v536 = vmul.f32 %v228, %v417
        %v537 = vmul.f32 %v228, %v421
        %v538 = vmul.f32 %v228, %v425
        %v539 = vmul.f32 %v228, %v429
        %v540 = vmul.f32 %v228, %v433
        %v541 = vmul.f32 %v228, %v437
        %v542 = vmul.f32 %v228, %v441
        %v543 = vmul.f32 %v228, %v445
        %v544 = vmul.f32 %v228, %v449
        %v545 = vmul.f32 %v228, %v453
        %v546 = vmul.f32 %v228, %v457
        %v547 = vmul.f32 %v228, %v461
        %v548 = vmul.f32 %v228, %v465
        %v549 = vmul.f32 %v228, %v469
        %v550 = vmul.f32 %v228, %v473
        %v551 = vmul.f32 %v228, %v477
        %v552 = vmul.f32 %v228, %v481
        %v553 = vmul.f32 %v228, %v485
        %v554 = vmul.f32 %v228, %v489
        %v555 = vmul.f32 %v228, %v493
        %v556 = vmul.f32 %v228, %v497
        %v557 = vmul.f32 %v228, %v501
        %v558 = vmul.f32 %v228, %v505
        %v559 = vmul.f32 %v228, %v509
        %v560 = vmul.f32 %v228, %v513
        %v561 = vmul.f32 %v228, %v517
        %v562 = vmul.f32 %v228, %v521
        %v563 = vmul.f32 %v228, %v525
        %v564 = vmul.f32 %v228, %v529
        %v565 = vmul.f32 %v228, %v533
        %567 = vset.pattern.permute.xlu0 0
        %568 = vperm.xlu0 %567, %v224
        %v569 = vpop.permute.xlu0 %568
        %v571 = vadd.f32 %v569, %v534
        %v572 = vadd.f32 %v569, %v535
        %v573 = vadd.f32 %v569, %v536
        %v574 = vadd.f32 %v569, %v537
        %v575 = vadd.f32 %v569, %v538
        %v576 = vadd.f32 %v569, %v539
        %v577 = vadd.f32 %v569, %v540
        %v578 = vadd.f32 %v569, %v541
        %v579 = vadd.f32 %v569, %v542
        %v580 = vadd.f32 %v569, %v543
        %v581 = vadd.f32 %v569, %v544
        %v582 = vadd.f32 %v569, %v545
        %v583 = vadd.f32 %v569, %v546
        %v584 = vadd.f32 %v569, %v547
        %v585 = vadd.f32 %v569, %v548
        %v586 = vadd.f32 %v569, %v549
        %v587 = vadd.f32 %v569, %v550
        %v588 = vadd.f32 %v569, %v551
        %v589 = vadd.f32 %v569, %v552
        %v590 = vadd.f32 %v569, %v553
        %v591 = vadd.f32 %v569, %v554
        %v592 = vadd.f32 %v569, %v555
        %v593 = vadd.f32 %v569, %v556
        %v594 = vadd.f32 %v569, %v557
        %v595 = vadd.f32 %v569, %v558
        %v596 = vadd.f32 %v569, %v559
        %v597 = vadd.f32 %v569, %v560
        %v598 = vadd.f32 %v569, %v561
        %v599 = vadd.f32 %v569, %v562
        %v600 = vadd.f32 %v569, %v563
        %v601 = vadd.f32 %v569, %v564
        %v602 = vadd.f32 %v569, %v565
        %603 = vset.pattern.permute.xlu0 1
        %604 = vperm.xlu0 %603, %v223
        %v605 = vpop.permute.xlu0 %604
        %v607 = vlaneseq
        %v608 = vshrl.u32 %v607, 7
        %v609 = vsub.s32 1, %v608
        %v610 = vrot.slane %v207, %v609
        %v611 = vlaneseq
        %v612 = vshrl.u32 %v611, 7
        %v613 = vsub.s32 5, %v612
        %v614 = vrot.slane %v207, %v613
        %v615 = vlaneseq
        %v616 = vshrl.u32 %v615, 7
        %v617 = vsub.s32 1, %v616
        %v618 = vrot.slane %v208, %v617
        %v619 = vlaneseq
        %v620 = vshrl.u32 %v619, 7
        %v621 = vsub.s32 5, %v620
        %v622 = vrot.slane %v208, %v621
        %v623 = vlaneseq
        %v624 = vshrl.u32 %v623, 7
        %v625 = vsub.s32 1, %v624
        %v626 = vrot.slane %v209, %v625
        %v627 = vlaneseq
        %v628 = vshrl.u32 %v627, 7
        %v629 = vsub.s32 5, %v628
        %v630 = vrot.slane %v209, %v629
        %v631 = vlaneseq
        %v632 = vshrl.u32 %v631, 7
        %v633 = vsub.s32 1, %v632
        %v634 = vrot.slane %v210, %v633
        %v635 = vlaneseq
        %v636 = vshrl.u32 %v635, 7
        %v637 = vsub.s32 5, %v636
        %v638 = vrot.slane %v210, %v637
        %v639 = vlaneseq
        %v640 = vshrl.u32 %v639, 7
        %v641 = vsub.s32 1, %v640
        %v642 = vrot.slane %v211, %v641
        %v643 = vlaneseq
        %v644 = vshrl.u32 %v643, 7
        %v645 = vsub.s32 5, %v644
        %v646 = vrot.slane %v211, %v645
        %v647 = vlaneseq
        %v648 = vshrl.u32 %v647, 7
        %v649 = vsub.s32 1, %v648
        %v650 = vrot.slane %v212, %v649
        %v651 = vlaneseq
        %v652 = vshrl.u32 %v651, 7
        %v653 = vsub.s32 5, %v652
        %v654 = vrot.slane %v212, %v653
        %v655 = vlaneseq
        %v656 = vshrl.u32 %v655, 7
        %v657 = vsub.s32 1, %v656
        %v658 = vrot.slane %v213, %v657
        %v659 = vlaneseq
        %v660 = vshrl.u32 %v659, 7
        %v661 = vsub.s32 5, %v660
        %v662 = vrot.slane %v213, %v661
        %v663 = vlaneseq
        %v664 = vshrl.u32 %v663, 7
        %v665 = vsub.s32 1, %v664
        %v666 = vrot.slane %v214, %v665
        %v667 = vlaneseq
        %v668 = vshrl.u32 %v667, 7
        %v669 = vsub.s32 5, %v668
        %v670 = vrot.slane %v214, %v669
        %v671 = vlaneseq
        %v672 = vshrl.u32 %v671, 7
        %v673 = vsub.s32 1, %v672
        %v674 = vrot.slane %v215, %v673
        %v675 = vlaneseq
        %v676 = vshrl.u32 %v675, 7
        %v677 = vsub.s32 5, %v676
        %v678 = vrot.slane %v215, %v677
        %v679 = vlaneseq
        %v680 = vshrl.u32 %v679, 7
        %v681 = vsub.s32 1, %v680
        %v682 = vrot.slane %v216, %v681
        %v683 = vlaneseq
        %v684 = vshrl.u32 %v683, 7
        %v685 = vsub.s32 5, %v684
        %v686 = vrot.slane %v216, %v685
        %v687 = vlaneseq
        %v688 = vshrl.u32 %v687, 7
        %v689 = vsub.s32 1, %v688
        %v690 = vrot.slane %v217, %v689
        %v691 = vlaneseq
        %v692 = vshrl.u32 %v691, 7
        %v693 = vsub.s32 5, %v692
        %v694 = vrot.slane %v217, %v693
        %v695 = vlaneseq
        %v696 = vshrl.u32 %v695, 7
        %v697 = vsub.s32 1, %v696
        %v698 = vrot.slane %v218, %v697
        %v699 = vlaneseq
        %v700 = vshrl.u32 %v699, 7
        %v701 = vsub.s32 5, %v700
        %v702 = vrot.slane %v218, %v701
        %v703 = vlaneseq
        %v704 = vshrl.u32 %v703, 7
        %v705 = vsub.s32 1, %v704
        %v706 = vrot.slane %v219, %v705
        %v707 = vlaneseq
        %v708 = vshrl.u32 %v707, 7
        %v709 = vsub.s32 5, %v708
        %v710 = vrot.slane %v219, %v709
        %v711 = vlaneseq
        %v712 = vshrl.u32 %v711, 7
        %v713 = vsub.s32 1, %v712
        %v714 = vrot.slane %v220, %v713
        %v715 = vlaneseq
        %v716 = vshrl.u32 %v715, 7
        %v717 = vsub.s32 5, %v716
        %v718 = vrot.slane %v220, %v717
        %v719 = vlaneseq
        %v720 = vshrl.u32 %v719, 7
        %v721 = vsub.s32 1, %v720
        %v722 = vrot.slane %v221, %v721
        %v723 = vlaneseq
        %v724 = vshrl.u32 %v723, 7
        %v725 = vsub.s32 5, %v724
        %v726 = vrot.slane %v221, %v725
        %v727 = vlaneseq
        %v728 = vshrl.u32 %v727, 7
        %v729 = vsub.s32 1, %v728
        %v730 = vrot.slane %v222, %v729
        %v731 = vlaneseq
        %v732 = vshrl.u32 %v731, 7
        %v733 = vsub.s32 5, %v732
        %v734 = vrot.slane %v222, %v733
        %v767 = vlaneseq
        %v768 = vshrl.u32 %v767, 7
        %v769 = vsub.s32 1, %v768
        %v770 = vrot.slane %v610, %v769
        %v771 = vlaneseq
        %v772 = vshrl.u32 %v771, 7
        %v773 = vsub.s32 1, %v772
        %v774 = vrot.slane %v614, %v773
        %v775 = vlaneseq
        %v776 = vshrl.u32 %v775, 7
        %v777 = vsub.s32 1, %v776
        %v778 = vrot.slane %v618, %v777
        %v779 = vlaneseq
        %v780 = vshrl.u32 %v779, 7
        %v781 = vsub.s32 1, %v780
        %v782 = vrot.slane %v622, %v781
        %v783 = vlaneseq
        %v784 = vshrl.u32 %v783, 7
        %v785 = vsub.s32 1, %v784
        %v786 = vrot.slane %v626, %v785
        %v787 = vlaneseq
        %v788 = vshrl.u32 %v787, 7
        %v789 = vsub.s32 1, %v788
        %v790 = vrot.slane %v630, %v789
        %v791 = vlaneseq
        %v792 = vshrl.u32 %v791, 7
        %v793 = vsub.s32 1, %v792
        %v794 = vrot.slane %v634, %v793
        %v795 = vlaneseq
        %v796 = vshrl.u32 %v795, 7
        %v797 = vsub.s32 1, %v796
        %v798 = vrot.slane %v638, %v797
        %v799 = vlaneseq
        %v800 = vshrl.u32 %v799, 7
        %v801 = vsub.s32 1, %v800
        %v802 = vrot.slane %v642, %v801
        %v803 = vlaneseq
        %v804 = vshrl.u32 %v803, 7
        %v805 = vsub.s32 1, %v804
        %v806 = vrot.slane %v646, %v805
        %v807 = vlaneseq
        %v808 = vshrl.u32 %v807, 7
        %v809 = vsub.s32 1, %v808
        %v810 = vrot.slane %v650, %v809
        %v811 = vlaneseq
        %v812 = vshrl.u32 %v811, 7
        %v813 = vsub.s32 1, %v812
        %v814 = vrot.slane %v654, %v813
        %v815 = vlaneseq
        %v816 = vshrl.u32 %v815, 7
        %v817 = vsub.s32 1, %v816
        %v818 = vrot.slane %v658, %v817
        %v819 = vlaneseq
        %v820 = vshrl.u32 %v819, 7
        %v821 = vsub.s32 1, %v820
        %v822 = vrot.slane %v662, %v821
        %v823 = vlaneseq
        %v824 = vshrl.u32 %v823, 7
        %v825 = vsub.s32 1, %v824
        %v826 = vrot.slane %v666, %v825
        %v827 = vlaneseq
        %v828 = vshrl.u32 %v827, 7
        %v829 = vsub.s32 1, %v828
        %v830 = vrot.slane %v670, %v829
        %v831 = vlaneseq
        %v832 = vshrl.u32 %v831, 7
        %v833 = vsub.s32 1, %v832
        %v834 = vrot.slane %v674, %v833
        %v835 = vlaneseq
        %v836 = vshrl.u32 %v835, 7
        %v837 = vsub.s32 1, %v836
        %v838 = vrot.slane %v678, %v837
        %v839 = vlaneseq
        %v840 = vshrl.u32 %v839, 7
        %v841 = vsub.s32 1, %v840
        %v842 = vrot.slane %v682, %v841
        %v843 = vlaneseq
        %v844 = vshrl.u32 %v843, 7
        %v845 = vsub.s32 1, %v844
        %v846 = vrot.slane %v686, %v845
        %v847 = vlaneseq
        %v848 = vshrl.u32 %v847, 7
        %v849 = vsub.s32 1, %v848
        %v850 = vrot.slane %v690, %v849
        %v851 = vlaneseq
        %v852 = vshrl.u32 %v851, 7
        %v853 = vsub.s32 1, %v852
        %v854 = vrot.slane %v694, %v853
        %v855 = vlaneseq
        %v856 = vshrl.u32 %v855, 7
        %v857 = vsub.s32 1, %v856
        %v858 = vrot.slane %v698, %v857
        %v859 = vlaneseq
        %v860 = vshrl.u32 %v859, 7
        %v861 = vsub.s32 1, %v860
        %v862 = vrot.slane %v702, %v861
        %v863 = vlaneseq
        %v864 = vshrl.u32 %v863, 7
        %v865 = vsub.s32 1, %v864
        %v866 = vrot.slane %v706, %v865
        %v867 = vlaneseq
        %v868 = vshrl.u32 %v867, 7
        %v869 = vsub.s32 1, %v868
        %v870 = vrot.slane %v710, %v869
        %v871 = vlaneseq
        %v872 = vshrl.u32 %v871, 7
        %v873 = vsub.s32 1, %v872
        %v874 = vrot.slane %v714, %v873
        %v875 = vlaneseq
        %v876 = vshrl.u32 %v875, 7
        %v877 = vsub.s32 1, %v876
        %v878 = vrot.slane %v718, %v877
        %v879 = vlaneseq
        %v880 = vshrl.u32 %v879, 7
        %v881 = vsub.s32 1, %v880
        %v882 = vrot.slane %v722, %v881
        %v883 = vlaneseq
        %v884 = vshrl.u32 %v883, 7
        %v885 = vsub.s32 1, %v884
        %v886 = vrot.slane %v726, %v885
        %v887 = vlaneseq
        %v888 = vshrl.u32 %v887, 7
        %v889 = vsub.s32 1, %v888
        %v890 = vrot.slane %v730, %v889
        %v891 = vlaneseq
        %v892 = vshrl.u32 %v891, 7
        %v893 = vsub.s32 1, %v892
        %v894 = vrot.slane %v734, %v893
        %v895 = vmul.f32 %v605, %v770
        %v896 = vmul.f32 %v605, %v774
        %v897 = vmul.f32 %v605, %v778
        %v898 = vmul.f32 %v605, %v782
        %v899 = vmul.f32 %v605, %v786
        %v900 = vmul.f32 %v605, %v790
        %v901 = vmul.f32 %v605, %v794
        %v902 = vmul.f32 %v605, %v798
        %v903 = vmul.f32 %v605, %v802
        %v904 = vmul.f32 %v605, %v806
        %v905 = vmul.f32 %v605, %v810
        %v906 = vmul.f32 %v605, %v814
        %v907 = vmul.f32 %v605, %v818
        %v908 = vmul.f32 %v605, %v822
        %v909 = vmul.f32 %v605, %v826
        %v910 = vmul.f32 %v605, %v830
        %v911 = vmul.f32 %v605, %v834
        %v912 = vmul.f32 %v605, %v838
        %v913 = vmul.f32 %v605, %v842
        %v914 = vmul.f32 %v605, %v846
        %v915 = vmul.f32 %v605, %v850
        %v916 = vmul.f32 %v605, %v854
        %v917 = vmul.f32 %v605, %v858
        %v918 = vmul.f32 %v605, %v862
        %v919 = vmul.f32 %v605, %v866
        %v920 = vmul.f32 %v605, %v870
        %v921 = vmul.f32 %v605, %v874
        %v922 = vmul.f32 %v605, %v878
        %v923 = vmul.f32 %v605, %v882
        %v924 = vmul.f32 %v605, %v886
        %v925 = vmul.f32 %v605, %v890
        %v926 = vmul.f32 %v605, %v894
        %v927 = vadd.f32 %v571, %v895
        %v928 = vadd.f32 %v572, %v896
        %v929 = vadd.f32 %v573, %v897
        %v930 = vadd.f32 %v574, %v898
        %v931 = vadd.f32 %v575, %v899
        %v932 = vadd.f32 %v576, %v900
        %v933 = vadd.f32 %v577, %v901
        %v934 = vadd.f32 %v578, %v902
        %v935 = vadd.f32 %v579, %v903
        %v936 = vadd.f32 %v580, %v904
        %v937 = vadd.f32 %v581, %v905
        %v938 = vadd.f32 %v582, %v906
        %v939 = vadd.f32 %v583, %v907
        %v940 = vadd.f32 %v584, %v908
        %v941 = vadd.f32 %v585, %v909
        %v942 = vadd.f32 %v586, %v910
        %v943 = vadd.f32 %v587, %v911
        %v944 = vadd.f32 %v588, %v912
        %v945 = vadd.f32 %v589, %v913
        %v946 = vadd.f32 %v590, %v914
        %v947 = vadd.f32 %v591, %v915
        %v948 = vadd.f32 %v592, %v916
        %v949 = vadd.f32 %v593, %v917
        %v950 = vadd.f32 %v594, %v918
        %v951 = vadd.f32 %v595, %v919
        %v952 = vadd.f32 %v596, %v920
        %v953 = vadd.f32 %v597, %v921
        %v954 = vadd.f32 %v598, %v922
        %v955 = vadd.f32 %v599, %v923
        %v956 = vadd.f32 %v600, %v924
        %v957 = vadd.f32 %v601, %v925
        %v958 = vadd.f32 %v602, %v926
        %959 = vset.pattern.permute.xlu0 2
        %960 = vperm.xlu0 %959, %v223
        %v961 = vpop.permute.xlu0 %960
        %v963 = vlaneseq
        %v964 = vshrl.u32 %v963, 7
        %v965 = vsub.s32 2, %v964
        %v966 = vrot.slane %v207, %v965
        %v967 = vlaneseq
        %v968 = vshrl.u32 %v967, 7
        %v969 = vsub.s32 6, %v968
        %v970 = vrot.slane %v207, %v969
        %v971 = vlaneseq
        %v972 = vshrl.u32 %v971, 7
        %v973 = vsub.s32 2, %v972
        %v974 = vrot.slane %v208, %v973
        %v975 = vlaneseq
        %v976 = vshrl.u32 %v975, 7
        %v977 = vsub.s32 6, %v976
        %v978 = vrot.slane %v208, %v977
        %v979 = vlaneseq
        %v980 = vshrl.u32 %v979, 7
        %v981 = vsub.s32 2, %v980
        %v982 = vrot.slane %v209, %v981
        %v983 = vlaneseq
        %v984 = vshrl.u32 %v983, 7
        %v985 = vsub.s32 6, %v984
        %v986 = vrot.slane %v209, %v985
        %v987 = vlaneseq
        %v988 = vshrl.u32 %v987, 7
        %v989 = vsub.s32 2, %v988
        %v990 = vrot.slane %v210, %v989
        %v991 = vlaneseq
        %v992 = vshrl.u32 %v991, 7
        %v993 = vsub.s32 6, %v992
        %v994 = vrot.slane %v210, %v993
        %v995 = vlaneseq
        %v996 = vshrl.u32 %v995, 7
        %v997 = vsub.s32 2, %v996
        %v998 = vrot.slane %v211, %v997
        %v999 = vlaneseq
        %v1000 = vshrl.u32 %v999, 7
        %v1001 = vsub.s32 6, %v1000
        %v1002 = vrot.slane %v211, %v1001
        %v1003 = vlaneseq
        %v1004 = vshrl.u32 %v1003, 7
        %v1005 = vsub.s32 2, %v1004
        %v1006 = vrot.slane %v212, %v1005
        %v1007 = vlaneseq
        %v1008 = vshrl.u32 %v1007, 7
        %v1009 = vsub.s32 6, %v1008
        %v1010 = vrot.slane %v212, %v1009
        %v1011 = vlaneseq
        %v1012 = vshrl.u32 %v1011, 7
        %v1013 = vsub.s32 2, %v1012
        %v1014 = vrot.slane %v213, %v1013
        %v1015 = vlaneseq
        %v1016 = vshrl.u32 %v1015, 7
        %v1017 = vsub.s32 6, %v1016
        %v1018 = vrot.slane %v213, %v1017
        %v1019 = vlaneseq
        %v1020 = vshrl.u32 %v1019, 7
        %v1021 = vsub.s32 2, %v1020
        %v1022 = vrot.slane %v214, %v1021
        %v1023 = vlaneseq
        %v1024 = vshrl.u32 %v1023, 7
        %v1025 = vsub.s32 6, %v1024
        %v1026 = vrot.slane %v214, %v1025
        %v1027 = vlaneseq
        %v1028 = vshrl.u32 %v1027, 7
        %v1029 = vsub.s32 2, %v1028
        %v1030 = vrot.slane %v215, %v1029
        %v1031 = vlaneseq
        %v1032 = vshrl.u32 %v1031, 7
        %v1033 = vsub.s32 6, %v1032
        %v1034 = vrot.slane %v215, %v1033
        %v1035 = vlaneseq
        %v1036 = vshrl.u32 %v1035, 7
        %v1037 = vsub.s32 2, %v1036
        %v1038 = vrot.slane %v216, %v1037
        %v1039 = vlaneseq
        %v1040 = vshrl.u32 %v1039, 7
        %v1041 = vsub.s32 6, %v1040
        %v1042 = vrot.slane %v216, %v1041
        %v1043 = vlaneseq
        %v1044 = vshrl.u32 %v1043, 7
        %v1045 = vsub.s32 2, %v1044
        %v1046 = vrot.slane %v217, %v1045
        %v1047 = vlaneseq
        %v1048 = vshrl.u32 %v1047, 7
        %v1049 = vsub.s32 6, %v1048
        %v1050 = vrot.slane %v217, %v1049
        %v1051 = vlaneseq
        %v1052 = vshrl.u32 %v1051, 7
        %v1053 = vsub.s32 2, %v1052
        %v1054 = vrot.slane %v218, %v1053
        %v1055 = vlaneseq
        %v1056 = vshrl.u32 %v1055, 7
        %v1057 = vsub.s32 6, %v1056
        %v1058 = vrot.slane %v218, %v1057
        %v1059 = vlaneseq
        %v1060 = vshrl.u32 %v1059, 7
        %v1061 = vsub.s32 2, %v1060
        %v1062 = vrot.slane %v219, %v1061
        %v1063 = vlaneseq
        %v1064 = vshrl.u32 %v1063, 7
        %v1065 = vsub.s32 6, %v1064
        %v1066 = vrot.slane %v219, %v1065
        %v1067 = vlaneseq
        %v1068 = vshrl.u32 %v1067, 7
        %v1069 = vsub.s32 2, %v1068
        %v1070 = vrot.slane %v220, %v1069
        %v1071 = vlaneseq
        %v1072 = vshrl.u32 %v1071, 7
        %v1073 = vsub.s32 6, %v1072
        %v1074 = vrot.slane %v220, %v1073
        %v1075 = vlaneseq
        %v1076 = vshrl.u32 %v1075, 7
        %v1077 = vsub.s32 2, %v1076
        %v1078 = vrot.slane %v221, %v1077
        %v1079 = vlaneseq
        %v1080 = vshrl.u32 %v1079, 7
        %v1081 = vsub.s32 6, %v1080
        %v1082 = vrot.slane %v221, %v1081
        %v1083 = vlaneseq
        %v1084 = vshrl.u32 %v1083, 7
        %v1085 = vsub.s32 2, %v1084
        %v1086 = vrot.slane %v222, %v1085
        %v1087 = vlaneseq
        %v1088 = vshrl.u32 %v1087, 7
        %v1089 = vsub.s32 6, %v1088
        %v1090 = vrot.slane %v222, %v1089
        %v1123 = vlaneseq
        %v1124 = vshrl.u32 %v1123, 7
        %v1125 = vsub.s32 2, %v1124
        %v1126 = vrot.slane %v966, %v1125
        %v1127 = vlaneseq
        %v1128 = vshrl.u32 %v1127, 7
        %v1129 = vsub.s32 2, %v1128
        %v1130 = vrot.slane %v970, %v1129
        %v1131 = vlaneseq
        %v1132 = vshrl.u32 %v1131, 7
        %v1133 = vsub.s32 2, %v1132
        %v1134 = vrot.slane %v974, %v1133
        %v1135 = vlaneseq
        %v1136 = vshrl.u32 %v1135, 7
        %v1137 = vsub.s32 2, %v1136
        %v1138 = vrot.slane %v978, %v1137
        %v1139 = vlaneseq
        %v1140 = vshrl.u32 %v1139, 7
        %v1141 = vsub.s32 2, %v1140
        %v1142 = vrot.slane %v982, %v1141
        %v1143 = vlaneseq
        %v1144 = vshrl.u32 %v1143, 7
        %v1145 = vsub.s32 2, %v1144
        %v1146 = vrot.slane %v986, %v1145
        %v1147 = vlaneseq
        %v1148 = vshrl.u32 %v1147, 7
        %v1149 = vsub.s32 2, %v1148
        %v1150 = vrot.slane %v990, %v1149
        %v1151 = vlaneseq
        %v1152 = vshrl.u32 %v1151, 7
        %v1153 = vsub.s32 2, %v1152
        %v1154 = vrot.slane %v994, %v1153
        %v1155 = vlaneseq
        %v1156 = vshrl.u32 %v1155, 7
        %v1157 = vsub.s32 2, %v1156
        %v1158 = vrot.slane %v998, %v1157
        %v1159 = vlaneseq
        %v1160 = vshrl.u32 %v1159, 7
        %v1161 = vsub.s32 2, %v1160
        %v1162 = vrot.slane %v1002, %v1161
        %v1163 = vlaneseq
        %v1164 = vshrl.u32 %v1163, 7
        %v1165 = vsub.s32 2, %v1164
        %v1166 = vrot.slane %v1006, %v1165
        %v1167 = vlaneseq
        %v1168 = vshrl.u32 %v1167, 7
        %v1169 = vsub.s32 2, %v1168
        %v1170 = vrot.slane %v1010, %v1169
        %v1171 = vlaneseq
        %v1172 = vshrl.u32 %v1171, 7
        %v1173 = vsub.s32 2, %v1172
        %v1174 = vrot.slane %v1014, %v1173
        %v1175 = vlaneseq
        %v1176 = vshrl.u32 %v1175, 7
        %v1177 = vsub.s32 2, %v1176
        %v1178 = vrot.slane %v1018, %v1177
        %v1179 = vlaneseq
        %v1180 = vshrl.u32 %v1179, 7
        %v1181 = vsub.s32 2, %v1180
        %v1182 = vrot.slane %v1022, %v1181
        %v1183 = vlaneseq
        %v1184 = vshrl.u32 %v1183, 7
        %v1185 = vsub.s32 2, %v1184
        %v1186 = vrot.slane %v1026, %v1185
        %v1187 = vlaneseq
        %v1188 = vshrl.u32 %v1187, 7
        %v1189 = vsub.s32 2, %v1188
        %v1190 = vrot.slane %v1030, %v1189
        %v1191 = vlaneseq
        %v1192 = vshrl.u32 %v1191, 7
        %v1193 = vsub.s32 2, %v1192
        %v1194 = vrot.slane %v1034, %v1193
        %v1195 = vlaneseq
        %v1196 = vshrl.u32 %v1195, 7
        %v1197 = vsub.s32 2, %v1196
        %v1198 = vrot.slane %v1038, %v1197
        %v1199 = vlaneseq
        %v1200 = vshrl.u32 %v1199, 7
        %v1201 = vsub.s32 2, %v1200
        %v1202 = vrot.slane %v1042, %v1201
        %v1203 = vlaneseq
        %v1204 = vshrl.u32 %v1203, 7
        %v1205 = vsub.s32 2, %v1204
        %v1206 = vrot.slane %v1046, %v1205
        %v1207 = vlaneseq
        %v1208 = vshrl.u32 %v1207, 7
        %v1209 = vsub.s32 2, %v1208
        %v1210 = vrot.slane %v1050, %v1209
        %v1211 = vlaneseq
        %v1212 = vshrl.u32 %v1211, 7
        %v1213 = vsub.s32 2, %v1212
        %v1214 = vrot.slane %v1054, %v1213
        %v1215 = vlaneseq
        %v1216 = vshrl.u32 %v1215, 7
        %v1217 = vsub.s32 2, %v1216
        %v1218 = vrot.slane %v1058, %v1217
        %v1219 = vlaneseq
        %v1220 = vshrl.u32 %v1219, 7
        %v1221 = vsub.s32 2, %v1220
        %v1222 = vrot.slane %v1062, %v1221
        %v1223 = vlaneseq
        %v1224 = vshrl.u32 %v1223, 7
        %v1225 = vsub.s32 2, %v1224
        %v1226 = vrot.slane %v1066, %v1225
        %v1227 = vlaneseq
        %v1228 = vshrl.u32 %v1227, 7
        %v1229 = vsub.s32 2, %v1228
        %v1230 = vrot.slane %v1070, %v1229
        %v1231 = vlaneseq
        %v1232 = vshrl.u32 %v1231, 7
        %v1233 = vsub.s32 2, %v1232
        %v1234 = vrot.slane %v1074, %v1233
        %v1235 = vlaneseq
        %v1236 = vshrl.u32 %v1235, 7
        %v1237 = vsub.s32 2, %v1236
        %v1238 = vrot.slane %v1078, %v1237
        %v1239 = vlaneseq
        %v1240 = vshrl.u32 %v1239, 7
        %v1241 = vsub.s32 2, %v1240
        %v1242 = vrot.slane %v1082, %v1241
        %v1243 = vlaneseq
        %v1244 = vshrl.u32 %v1243, 7
        %v1245 = vsub.s32 2, %v1244
        %v1246 = vrot.slane %v1086, %v1245
        %v1247 = vlaneseq
        %v1248 = vshrl.u32 %v1247, 7
        %v1249 = vsub.s32 2, %v1248
        %v1250 = vrot.slane %v1090, %v1249
        %v1251 = vmul.f32 %v961, %v1126
        %v1252 = vmul.f32 %v961, %v1130
        %v1253 = vmul.f32 %v961, %v1134
        %v1254 = vmul.f32 %v961, %v1138
        %v1255 = vmul.f32 %v961, %v1142
        %v1256 = vmul.f32 %v961, %v1146
        %v1257 = vmul.f32 %v961, %v1150
        %v1258 = vmul.f32 %v961, %v1154
        %v1259 = vmul.f32 %v961, %v1158
        %v1260 = vmul.f32 %v961, %v1162
        %v1261 = vmul.f32 %v961, %v1166
        %v1262 = vmul.f32 %v961, %v1170
        %v1263 = vmul.f32 %v961, %v1174
        %v1264 = vmul.f32 %v961, %v1178
        %v1265 = vmul.f32 %v961, %v1182
        %v1266 = vmul.f32 %v961, %v1186
        %v1267 = vmul.f32 %v961, %v1190
        %v1268 = vmul.f32 %v961, %v1194
        %v1269 = vmul.f32 %v961, %v1198
        %v1270 = vmul.f32 %v961, %v1202
        %v1271 = vmul.f32 %v961, %v1206
        %v1272 = vmul.f32 %v961, %v1210
        %v1273 = vmul.f32 %v961, %v1214
        %v1274 = vmul.f32 %v961, %v1218
        %v1275 = vmul.f32 %v961, %v1222
        %v1276 = vmul.f32 %v961, %v1226
        %v1277 = vmul.f32 %v961, %v1230
        %v1278 = vmul.f32 %v961, %v1234
        %v1279 = vmul.f32 %v961, %v1238
        %v1280 = vmul.f32 %v961, %v1242
        %v1281 = vmul.f32 %v961, %v1246
        %v1282 = vmul.f32 %v961, %v1250
        %v1283 = vadd.f32 %v927, %v1251
        %v1284 = vadd.f32 %v928, %v1252
        %v1285 = vadd.f32 %v929, %v1253
        %v1286 = vadd.f32 %v930, %v1254
        %v1287 = vadd.f32 %v931, %v1255
        %v1288 = vadd.f32 %v932, %v1256
        %v1289 = vadd.f32 %v933, %v1257
        %v1290 = vadd.f32 %v934, %v1258
        %v1291 = vadd.f32 %v935, %v1259
        %v1292 = vadd.f32 %v936, %v1260
        %v1293 = vadd.f32 %v937, %v1261
        %v1294 = vadd.f32 %v938, %v1262
        %v1295 = vadd.f32 %v939, %v1263
        %v1296 = vadd.f32 %v940, %v1264
        %v1297 = vadd.f32 %v941, %v1265
        %v1298 = vadd.f32 %v942, %v1266
        %v1299 = vadd.f32 %v943, %v1267
        %v1300 = vadd.f32 %v944, %v1268
        %v1301 = vadd.f32 %v945, %v1269
        %v1302 = vadd.f32 %v946, %v1270
        %v1303 = vadd.f32 %v947, %v1271
        %v1304 = vadd.f32 %v948, %v1272
        %v1305 = vadd.f32 %v949, %v1273
        %v1306 = vadd.f32 %v950, %v1274
        %v1307 = vadd.f32 %v951, %v1275
        %v1308 = vadd.f32 %v952, %v1276
        %v1309 = vadd.f32 %v953, %v1277
        %v1310 = vadd.f32 %v954, %v1278
        %v1311 = vadd.f32 %v955, %v1279
        %v1312 = vadd.f32 %v956, %v1280
        %v1313 = vadd.f32 %v957, %v1281
        %v1314 = vadd.f32 %v958, %v1282
        %v1315 = vmax.f32 %v1283, 0.0
        %v1316 = vmax.f32 %v1284, 0.0
        %v1317 = vmax.f32 %v1285, 0.0
        %v1318 = vmax.f32 %v1286, 0.0
        %v1319 = vmax.f32 %v1287, 0.0
        %v1320 = vmax.f32 %v1288, 0.0
        %v1321 = vmax.f32 %v1289, 0.0
        %v1322 = vmax.f32 %v1290, 0.0
        %v1323 = vmax.f32 %v1291, 0.0
        %v1324 = vmax.f32 %v1292, 0.0
        %v1325 = vmax.f32 %v1293, 0.0
        %v1326 = vmax.f32 %v1294, 0.0
        %v1327 = vmax.f32 %v1295, 0.0
        %v1328 = vmax.f32 %v1296, 0.0
        %v1329 = vmax.f32 %v1297, 0.0
        %v1330 = vmax.f32 %v1298, 0.0
        %v1331 = vmax.f32 %v1299, 0.0
        %v1332 = vmax.f32 %v1300, 0.0
        %v1333 = vmax.f32 %v1301, 0.0
        %v1334 = vmax.f32 %v1302, 0.0
        %v1335 = vmax.f32 %v1303, 0.0
        %v1336 = vmax.f32 %v1304, 0.0
        %v1337 = vmax.f32 %v1305, 0.0
        %v1338 = vmax.f32 %v1306, 0.0
        %v1339 = vmax.f32 %v1307, 0.0
        %v1340 = vmax.f32 %v1308, 0.0
        %v1341 = vmax.f32 %v1309, 0.0
        %v1342 = vmax.f32 %v1310, 0.0
        %v1343 = vmax.f32 %v1311, 0.0
        %v1344 = vmax.f32 %v1312, 0.0
        %v1345 = vmax.f32 %v1313, 0.0
        %v1346 = vmax.f32 %v1314, 0.0
        %v1347 = vmin.f32 %v1315, 6.0
        %v1348 = vmin.f32 %v1316, 6.0
        %v1349 = vmin.f32 %v1317, 6.0
        %v1350 = vmin.f32 %v1318, 6.0
        %v1351 = vmin.f32 %v1319, 6.0
        %v1352 = vmin.f32 %v1320, 6.0
        %v1353 = vmin.f32 %v1321, 6.0
        %v1354 = vmin.f32 %v1322, 6.0
        %v1355 = vmin.f32 %v1323, 6.0
        %v1356 = vmin.f32 %v1324, 6.0
        %v1357 = vmin.f32 %v1325, 6.0
        %v1358 = vmin.f32 %v1326, 6.0
        %v1359 = vmin.f32 %v1327, 6.0
        %v1360 = vmin.f32 %v1328, 6.0
        %v1361 = vmin.f32 %v1329, 6.0
        %v1362 = vmin.f32 %v1330, 6.0
        %v1363 = vmin.f32 %v1331, 6.0
        %v1364 = vmin.f32 %v1332, 6.0
        %v1365 = vmin.f32 %v1333, 6.0
        %v1366 = vmin.f32 %v1334, 6.0
        %v1367 = vmin.f32 %v1335, 6.0
        %v1368 = vmin.f32 %v1336, 6.0
        %v1369 = vmin.f32 %v1337, 6.0
        %v1370 = vmin.f32 %v1338, 6.0
        %v1371 = vmin.f32 %v1339, 6.0
        %v1372 = vmin.f32 %v1340, 6.0
        %v1373 = vmin.f32 %v1341, 6.0
        %v1374 = vmin.f32 %v1342, 6.0
        %v1375 = vmin.f32 %v1343, 6.0
        %v1376 = vmin.f32 %v1344, 6.0
        %v1377 = vmin.f32 %v1345, 6.0
        %v1378 = vmin.f32 %v1346, 6.0
        %v1379 = vmul.f32 %v1347, 0.16666667
        %v1380 = vmul.f32 %v1348, 0.16666667
        %v1381 = vmul.f32 %v1349, 0.16666667
        %v1382 = vmul.f32 %v1350, 0.16666667
        %v1383 = vmul.f32 %v1351, 0.16666667
        %v1384 = vmul.f32 %v1352, 0.16666667
        %v1385 = vmul.f32 %v1353, 0.16666667
        %v1386 = vmul.f32 %v1354, 0.16666667
        %v1387 = vmul.f32 %v1355, 0.16666667
        %v1388 = vmul.f32 %v1356, 0.16666667
        %v1389 = vmul.f32 %v1357, 0.16666667
        %v1390 = vmul.f32 %v1358, 0.16666667
        %v1391 = vmul.f32 %v1359, 0.16666667
        %v1392 = vmul.f32 %v1360, 0.16666667
        %v1393 = vmul.f32 %v1361, 0.16666667
        %v1394 = vmul.f32 %v1362, 0.16666667
        %v1395 = vmul.f32 %v1363, 0.16666667
        %v1396 = vmul.f32 %v1364, 0.16666667
        %v1397 = vmul.f32 %v1365, 0.16666667
        %v1398 = vmul.f32 %v1366, 0.16666667
        %v1399 = vmul.f32 %v1367, 0.16666667
        %v1400 = vmul.f32 %v1368, 0.16666667
        %v1401 = vmul.f32 %v1369, 0.16666667
        %v1402 = vmul.f32 %v1370, 0.16666667
        %v1403 = vmul.f32 %v1371, 0.16666667
        %v1404 = vmul.f32 %v1372, 0.16666667
        %v1405 = vmul.f32 %v1373, 0.16666667
        %v1406 = vmul.f32 %v1374, 0.16666667
        %v1407 = vmul.f32 %v1375, 0.16666667
        %v1408 = vmul.f32 %v1376, 0.16666667
        %v1409 = vmul.f32 %v1377, 0.16666667
        %v1410 = vmul.f32 %v1378, 0.16666667
        %1411 = vst [vmem:[%s204] sm:$0xff] %v1379
        %1412 = vst [vmem:[%s204 + $0x8] sm:$0xff] %v1380
        %1413 = vst [vmem:[%s204 + $0x10] sm:$0xff] %v1381
        %1414 = vst [vmem:[%s204 + $0x18] sm:$0xff] %v1382
        %1415 = vst [vmem:[%s204 + $0x20] sm:$0xff] %v1383
        %1416 = vst [vmem:[%s204 + $0x28] sm:$0xff] %v1384
        %1417 = vst [vmem:[%s204 + $0x30] sm:$0xff] %v1385
        %1418 = vst [vmem:[%s204 + $0x38] sm:$0xff] %v1386
        %1419 = vst [vmem:[%s204 + $0x40] sm:$0xff] %v1387
        %1420 = vst [vmem:[%s204 + $0x48] sm:$0xff] %v1388
        %1421 = vst [vmem:[%s204 + $0x50] sm:$0xff] %v1389
        %1422 = vst [vmem:[%s204 + $0x58] sm:$0xff] %v1390
        %1423 = vst [vmem:[%s204 + $0x60] sm:$0xff] %v1391
        %1424 = vst [vmem:[%s204 + $0x68] sm:$0xff] %v1392
        %1425 = vst [vmem:[%s204 + $0x70] sm:$0xff] %v1393
        %1426 = vst [vmem:[%s204 + $0x78] sm:$0xff] %v1394
        %1427 = vst [vmem:[%s204 + $0x80] sm:$0xff] %v1395
        %1428 = vst [vmem:[%s204 + $0x88] sm:$0xff] %v1396
        %1429 = vst [vmem:[%s204 + $0x90] sm:$0xff] %v1397
        %1430 = vst [vmem:[%s204 + $0x98] sm:$0xff] %v1398
        %1431 = vst [vmem:[%s204 + $0xa0] sm:$0xff] %v1399
        %1432 = vst [vmem:[%s204 + $0xa8] sm:$0xff] %v1400
        %1433 = vst [vmem:[%s204 + $0xb0] sm:$0xff] %v1401
        %1434 = vst [vmem:[%s204 + $0xb8] sm:$0xff] %v1402
        %1435 = vst [vmem:[%s204 + $0xc0] sm:$0xff] %v1403
        %1436 = vst [vmem:[%s204 + $0xc8] sm:$0xff] %v1404
        %1437 = vst [vmem:[%s204 + $0xd0] sm:$0xff] %v1405
        %1438 = vst [vmem:[%s204 + $0xd8] sm:$0xff] %v1406
        %1439 = vst [vmem:[%s204 + $0xe0] sm:$0xff] %v1407
        %1440 = vst [vmem:[%s204 + $0xe8] sm:$0xff] %v1408
        %1441 = vst [vmem:[%s204 + $0xf0] sm:$0xff] %v1409
        %1442 = vst [vmem:[%s204 + $0xf8] sm:$0xff] %v1410
        %s1443 = sand.u32 %s112, 1
        %s1444 = scalar_lea.sflag [#allocation4], %s1443
        %s1445 = sand.u32 %s112, 1
        %s1446 = smul.addr %s1445, 256
        %s1447 = scalar_lea.vmem [#allocation5], %s1446
        // Predicated region
        $region37: #{tpu_custom_call.1} parent=31 // pred_check
          %p1448 = pneg %p122
        $region38: #{tpu_custom_call.1} parent=31 // pred_check_branch
          %1450 = sbr.rel (%p1448) target = $region40
        $region39: #{tpu_custom_call.1} parent=31 // pred_region
          %s1451 = smul.u32 32, %s25
          %s1453 = ssub.s32 4096, 4096
          %1454 = vsyncadd %s1444, %s1453
          %s1455 = smul.addr %s24, 32
          %s1456 = sadd.s32 %s1451, %s1455
          %s1457 = smul.addr %s1456, 128
          %s1458 = scalar_lea.hbm %s3, %s1457
          %s1460 = sshll.u32 %s1447, 4
          %s1461 = int_to_ptr.vmem [resolvable:$true] %s1460
          %1463 = dma.vmem_to_hbm [thread:$0]  %s1461, 4096, %s1458, %s1444
        $region40: #{tpu_custom_call.1} parent=31 // pred_fallthru
          _
      $region32: #{tpu_custom_call.1} parent=5 // pred_fallthru
        _
      %p1464 = scmp.le.s32.totalorder 2, %s15
      // Predicated region
      $region41: #{tpu_custom_call.1} parent=5 // pred_check
        %p1465 = pneg %p1464
      $region42: #{tpu_custom_call.1} parent=5 // pred_check_branch
        %1467 = sbr.rel (%p1465) target = $region44
      $region43: #{tpu_custom_call.1} parent=5 // pred_region
        %s1468 = ssub.s32 %s15, 2
        // Predicated region
        $region45: #{tpu_custom_call.1} parent=43 // pred_check
          %p1469 = pneg %p128
        $region46: #{tpu_custom_call.1} parent=43 // pred_check_branch
          %1471 = sbr.rel (%p1469) target = $region48
        $region47: #{tpu_custom_call.1} parent=43 // pred_region
          %s1472 = sand.u32 %s113, 1
          %s1473 = scalar_lea.sflag [#allocation4], %s1472
          %s1474 = sand.u32 %s113, 1
          %s1475 = smul.addr %s1474, 256
          %s1476 = scalar_lea.vmem [#allocation5], %s1475
          %1477 = dma.done %s1473, 4096
        $region48: #{tpu_custom_call.1} parent=43 // pred_fallthru
          _
      $region44: #{tpu_custom_call.1} parent=5 // pred_fallthru
        _
    $region6: #{tpu_custom_call.1} parent=1 // loop_footer
      %s19 = sadd.s32 1, %s15
    $region7: #{tpu_custom_call.1} parent=1 // loop_footer_branch
      %14 = sbr.rel target = $region3
    $region8: #{tpu_custom_call.1} parent=1 // loop_exit
      _
    %1478 = vsyncpa [#allocation3], 1
    %s1479 = scalar_lea.sflag [#allocation3], 1
    %1480 = vsyncpa %s1479, 1
    %1481 = vsyncpa [#allocation4], 1
    %s1482 = scalar_lea.sflag [#allocation4], 1
    %1483 = vsyncpa %s1482, 1

</llo_original>
